<compile_context>
chip_gen: v7x
topology: tpu7x:2x2x1
jax: 0.10.0
libtpu: 0.0.40
codegen_flags: <defaults>
</compile_context>

<pallas_src>
import jax
import jax.numpy as jnp
from jax.experimental import pallas as pl
from jax.experimental.pallas import tpu as pltpu


def _fusion_kernel(x1_ref, x2_ref, w1_ref, w2_ref, b_ref, o_ref):
    # x1:(tm,D1) x2:(tm,D2) bf16, w1:(D1,tn) w2:(D2,tn) bf16, b:(1,tn) f32.
    acc = jnp.dot(x1_ref[...], w1_ref[...], preferred_element_type=jnp.float32)
    acc = acc + jnp.dot(x2_ref[...], w2_ref[...],
                        preferred_element_type=jnp.float32)
    o_ref[...] = (acc + b_ref[...]).astype(o_ref.dtype)


def _vmem_capacity_bytes():
    try:
        return int(pltpu.get_tpu_info().vmem_capacity_bytes)
    except Exception:
        return 64 * 1024 * 1024  # conservative fallback (v7x per-TC VMEM)


def _select_tn(dout, fits):
    """Largest tile of the output-feature dim that fits the VMEM budget.

    Prefers tn == Dout (single pass over the activations).  Falls back to the
    largest multiple-of-128 divisor of Dout that fits; if Dout is not a
    multiple of 128 it is used whole (lane-masked stores: perf, not
    correctness).
    """
    if dout % 128 != 0:
        return dout
    for cand in range(dout, 127, -128):
        if dout % cand == 0 and fits(cand):
            return cand
    # Even tn=128 over budget: return it anyway.  A K (contraction) grid axis
    # with an f32 accumulator would be the next refinement for huge D1+D2.
    return 128


def fusion_layer(pc_feats, img_feats, weight, bias, *, tm=256,
                 compute_dtype=jnp.bfloat16):
    """Pallas implementation of cat([pc, img], dim=1) @ W.T + b.

    pc_feats : (B, D1)
    img_feats: (B, D2)
    weight   : (Dout, D1 + D2)   -- PyTorch nn.Linear layout
    bias     : (Dout,)
    returns  : (B, Dout) in the dtype of pc_feats
    """
    B, D1 = pc_feats.shape
    B2, D2 = img_feats.shape
    Dout, Din = weight.shape
    assert B2 == B and Din == D1 + D2
    out_dtype = pc_feats.dtype

    # One-time (outside-kernel) transpose + split into canonical (K, N) layout,
    # plus bf16 cast for the MXU.  Accumulation stays f32 inside the kernel.
    w1 = weight[:, :D1].T.astype(compute_dtype)          # (D1, Dout)
    w2 = weight[:, D1:].T.astype(compute_dtype)          # (D2, Dout)
    x1 = pc_feats.astype(compute_dtype)
    x2 = img_feats.astype(compute_dtype)
    b2d = bias.astype(jnp.float32).reshape(1, Dout)

    # ---- batch tile: small B -> single full-dim block (no padding, no (8,128)
    # constraint); large B -> tm=256 with a cdiv grid (masked partial last block).
    tm = B if B <= tm else tm

    # ---- per-generation VMEM budget for the double-buffered working set.
    act_bytes = jnp.dtype(compute_dtype).itemsize
    out_bytes = jnp.dtype(out_dtype).itemsize
    vmem_cap = _vmem_capacity_bytes()
    budget = int(0.75 * vmem_cap)

    def _footprint(tn_):
        fp = 2 * (tm * (D1 + D2) + (D1 + D2) * tn_) * act_bytes   # x1,x2,w1,w2
        fp += 2 * tm * tn_ * out_bytes                            # output tile
        fp += 2 * tn_ * 4                                         # bias
        return fp

    def _fits(tn_):
        return _footprint(tn_) <= budget

    tn = _select_tn(Dout, _fits)
    n_j = pl.cdiv(Dout, tn)
    n_i = pl.cdiv(B, tm)

    # v7x megacore: if the whole problem collapsed to one grid step, split Dout
    # into two tiles so both TensorCores get work (no effect on v5e/v6e).
    if n_j == 1 and n_i == 1 and Dout % 256 == 0 and _fits(Dout // 2):
        tn = Dout // 2
        n_j = 2

    vmem_limit = max(32 * 1024 * 1024, budget)

    out = pl.pallas_call(
        _fusion_kernel,
        out_shape=jax.ShapeDtypeStruct((B, Dout), out_dtype),
        grid_spec=pltpu.PrefetchScalarGridSpec(
            num_scalar_prefetch=0,
            # Output-feature tiles outer, batch innermost: each weight tile is
            # DMA'd once and stays resident while the batch streams through.
            grid=(n_j, n_i),
            in_specs=[
                pl.BlockSpec((tm, D1), lambda j, i: (i, 0)),
                pl.BlockSpec((tm, D2), lambda j, i: (i, 0)),
                pl.BlockSpec((D1, tn), lambda j, i: (0, j)),
                pl.BlockSpec((D2, tn), lambda j, i: (0, j)),
                pl.BlockSpec((1, tn), lambda j, i: (0, j)),
            ],
            out_specs=pl.BlockSpec((tm, tn), lambda j, i: (i, j)),
        ),
        compiler_params=pltpu.CompilerParams(
            dimension_semantics=("parallel", "parallel"),
            vmem_limit_bytes=vmem_limit,
        ),
    )(x1, x2, w1, w2, b2d)
    return out


if __name__ == "__main__":
    # Small shapes consistent with the module (defaults 1024 -> shrunk).
    # B=20 exercises the full-dim (no padding) batch block; D1 != D2 exercises
    # the host-side weight split; Dout=256 exercises the two-tile (megacore)
    # output split.
    B, D1, D2, DOUT = 20, 128, 256, 256

    key = jax.random.PRNGKey(0)
    k1, k2, kw, kb = jax.random.split(key, 4)

    pc_feats = jax.random.normal(k1, (B, D1), dtype=jnp.float32)
    img_feats = jax.random.normal(k2, (B, D2), dtype=jnp.float32)

    # Deterministic nn.Linear-style init: U(-bound, bound), bound = 1/sqrt(fan_in)
    fan_in = D1 + D2
    bound = 1.0 / float(fan_in) ** 0.5
    weight = jax.random.uniform(kw, (DOUT, fan_in), dtype=jnp.float32,
                                minval=-bound, maxval=bound)
    bias = jax.random.uniform(kb, (DOUT,), dtype=jnp.float32,
                              minval=-bound, maxval=bound)

    out = jax.block_until_ready(fusion_layer(pc_feats, img_feats, weight, bias))

    # References: (a) bf16-rounded inputs with f32 accumulation (what the
    # kernel computes), (b) pure-f32 PyTorch-equivalent forward (loose tol,
    # documents the bf16 precision tradeoff).
    fused = jnp.concatenate([pc_feats, img_feats], axis=1)
    ref_f32 = fused @ weight.T + bias
    fused_bf = fused.astype(jnp.bfloat16).astype(jnp.float32)
    w_bf = weight.astype(jnp.bfloat16).astype(jnp.float32)
    ref_bf16 = fused_bf @ w_bf.T + bias

    assert out.shape == (B, DOUT)
    assert jnp.allclose(out, ref_bf16, atol=2e-3, rtol=2e-3), \
        float(jnp.max(jnp.abs(out - ref_bf16)))
    assert jnp.allclose(out, ref_f32, atol=3e-2, rtol=3e-2)

    print("KERNEL_OK")
</pallas_src>

<mosaic_0001>
module attributes {stable_mosaic.version = 11 : i64} {
  func.func @_fusion_kernel(%arg0: i32, %arg1: i32, %arg2: memref<20x128xbf16, #tpu.memory_space<vmem>>, %arg3: memref<20x256xbf16, #tpu.memory_space<vmem>>, %arg4: memref<128x128xbf16, #tpu.memory_space<vmem>>, %arg5: memref<256x128xbf16, #tpu.memory_space<vmem>>, %arg6: memref<1x128xf32, #tpu.memory_space<vmem>>, %arg7: memref<20x128xf32, #tpu.memory_space<vmem>>) attributes {dimension_semantics = [#tpu.dimension_semantics<parallel>, #tpu.dimension_semantics<parallel>], iteration_bounds = array<i64: 2, 1>, scalar_prefetch = 0 : i64, scratch_operands = 0 : i64, tpu.core_type = #tpu.core_type<tc>, window_params = [{transform_indices = @transform_0, window_bounds = array<i64: 20, 128>}, {transform_indices = @transform_1, window_bounds = array<i64: 20, 256>}, {transform_indices = @transform_2, window_bounds = array<i64: 128, 128>}, {transform_indices = @transform_3, window_bounds = array<i64: 256, 128>}, {transform_indices = @transform_4, window_bounds = array<i64: 1, 128>}, {transform_indices = @transform_5, window_bounds = array<i64: 20, 128>}]} {
    %c0 = arith.constant 0 : index
    %c0_0 = arith.constant 0 : index
    %0 = vector.load %arg2[%c0, %c0_0] : memref<20x128xbf16, #tpu.memory_space<vmem>>, vector<20x128xbf16>
    %c0_1 = arith.constant 0 : index
    %c0_2 = arith.constant 0 : index
    %1 = vector.load %arg4[%c0_1, %c0_2] : memref<128x128xbf16, #tpu.memory_space<vmem>>, vector<128x128xbf16>
    %cst = arith.constant dense<0.000000e+00> : vector<20x128xf32>
    %2 = tpu.matmul %0, %1, %cst {dimension_numbers = #tpu.dot_dimension_numbers<[1], [0], [0], [1], [0, 0, 1, 1], [], []>} : vector<20x128xbf16>, vector<128x128xbf16>, vector<20x128xf32> -> vector<20x128xf32>
    %c0_3 = arith.constant 0 : index
    %c0_4 = arith.constant 0 : index
    %3 = vector.load %arg3[%c0_3, %c0_4] : memref<20x256xbf16, #tpu.memory_space<vmem>>, vector<20x256xbf16>
    %c0_5 = arith.constant 0 : index
    %c0_6 = arith.constant 0 : index
    %4 = vector.load %arg5[%c0_5, %c0_6] : memref<256x128xbf16, #tpu.memory_space<vmem>>, vector<256x128xbf16>
    %cst_7 = arith.constant dense<0.000000e+00> : vector<20x128xf32>
    %5 = tpu.matmul %3, %4, %cst_7 {dimension_numbers = #tpu.dot_dimension_numbers<[1], [0], [0], [1], [0, 0, 1, 1], [], []>} : vector<20x256xbf16>, vector<256x128xbf16>, vector<20x128xf32> -> vector<20x128xf32>
    %6 = arith.addf %2, %5 : vector<20x128xf32>
    %c0_8 = arith.constant 0 : index
    %c0_9 = arith.constant 0 : index
    %7 = vector.load %arg6[%c0_8, %c0_9] : memref<1x128xf32, #tpu.memory_space<vmem>>, vector<1x128xf32>
    %8 = vector.broadcast %7 : vector<1x128xf32> to vector<20x128xf32>
    %9 = arith.addf %6, %8 : vector<20x128xf32>
    %c0_10 = arith.constant 0 : index
    %c0_11 = arith.constant 0 : index
    %10 = vector.load %arg7[%c0_10, %c0_11] : memref<20x128xf32, #tpu.memory_space<vmem>>, vector<20x128xf32>
    tpu.vector_store %arg7[%c0_10, %c0_11], %9 {strides = array<i32>} : memref<20x128xf32, #tpu.memory_space<vmem>>, vector<20x128xf32>,
    return
  }
  func.func @transform_0(%arg0: i32, %arg1: i32) -> (i32, i32) {
    %c0_i32 = arith.constant 0 : i32
    %c0_i32_0 = arith.constant 0 : i32
    return %arg1, %c0_i32 : i32, i32
  }
  func.func @transform_1(%arg0: i32, %arg1: i32) -> (i32, i32) {
    %c0_i32 = arith.constant 0 : i32
    %c0_i32_0 = arith.constant 0 : i32
    return %arg1, %c0_i32 : i32, i32
  }
  func.func @transform_2(%arg0: i32, %arg1: i32) -> (i32, i32) {
    %c0_i32 = arith.constant 0 : i32
    %c0_i32_0 = arith.constant 0 : i32
    return %c0_i32, %arg0 : i32, i32
  }
  func.func @transform_3(%arg0: i32, %arg1: i32) -> (i32, i32) {
    %c0_i32 = arith.constant 0 : i32
    %c0_i32_0 = arith.constant 0 : i32
    return %c0_i32, %arg0 : i32, i32
  }
  func.func @transform_4(%arg0: i32, %arg1: i32) -> (i32, i32) {
    %c0_i32 = arith.constant 0 : i32
    %c0_i32_0 = arith.constant 0 : i32
    return %c0_i32, %arg0 : i32, i32
  }
  func.func @transform_5(%arg0: i32, %arg1: i32) -> (i32, i32) {
    %c0_i32 = arith.constant 0 : i32
    return %arg1, %arg0 : i32, i32
  }
}

</mosaic_0001>

<llo_original>
// kernel: tpu_custom_call.1
$region0: #{tpu_custom_call.1}
  #allocation0 [shape = 'u32[]', space=smem, size = 0x4, offset = 0x4, fixed_abs, tag = 'smem constant byte address 0x4 - core index']
  #allocation1 [shape = 'u32[144,128]{1,0:T(1,128)}', space=vmem, size = 0x12000, scoped, tag = 'internal scratch']
  %s0 = inlined_call_operand.hbm [shape: bf16[20,128], index: 0, kind: input, shape index: {}]
  %s1 = inlined_call_operand.hbm [shape: bf16[20,256], index: 1, kind: input, shape index: {}]
  %s2 = inlined_call_operand.hbm [shape: bf16[128,256], index: 2, kind: input, shape index: {}]
  %s3 = inlined_call_operand.hbm [shape: bf16[256,256], index: 3, kind: input, shape index: {}]
  %s4 = inlined_call_operand.vmem [shape: f32[1,256], index: 4, kind: input, shape index: {}]
  %s5 = inlined_call_operand.hbm [shape: f32[20,256], index: 5, kind: output, shape index: {}]
  %s6 = sld [smem:[#allocation0]]
  $region69: #{tpu_custom_call.1} parent=0
    _
  %s8 = ssub.s32 1, %s6
  %s9 = scalar_select 0, %s8, %s6
  $region1: #{tpu_custom_call.1} parent=0
    #allocation2 [shape = 'u8[6144]{0}', space=vmem, size = 0x1800, scoped, tag = 'input window, operand 0, single buffered']
    #allocation3 [shape = 's32[2]{0}', space=sflag, size = 0x8, scoped, tag = 'scoped memory for tpu_custom_call.1']
    #allocation4 [shape = 's32[2]{0}', space=sflag, size = 0x8, scoped, tag = 'scoped memory for tpu_custom_call.1']
    #allocation5 [shape = 'u8[12288]{0}', space=vmem, size = 0x3000, scoped, tag = 'input window, operand 1, single buffered']
    #allocation6 [shape = 's32[1]{0}', space=sflag, size = 0x4, scoped, tag = 'scoped memory for tpu_custom_call.1']
    #allocation7 [shape = 'u8[65536]{0}', space=vmem, size = 0x10000, scoped, tag = 'input window, operand 2']
    #allocation8 [shape = 'u8[131072]{0}', space=vmem, size = 0x20000, scoped, tag = 'input window, operand 3']
    #allocation9 [shape = 'u8[24576]{0}', space=vmem, size = 0x6000, scoped, tag = 'output window, operand 0']
    %10 = vsyncpa [#allocation3], 0
    %11 = vsyncpa [#allocation6], 0
    %12 = vsyncpa [#allocation4], 0
    %s13 = scalar_lea.sflag [#allocation4], 1
    %14 = vsyncpa %s13, 0
    loop: start=0, step=1, limit=4
    $region2: #{tpu_custom_call.1} parent=1 // loop_pre_header
      _
    $region3: #{tpu_custom_call.1} parent=1 // loop_header
      %s16 = sphi 0, %s20
      %p17 = scmp.ge.s32.totalorder %s16, 4
      %s23 = sphi 0, %s35
      %s24 = sphi 0, %s31
      %s25 = sphi 0, %s23
      %s26 = sphi 0, %s24
      %s27 = sphi 0, %s25
      %s28 = sphi 0, %s26
      %s38 = sphi 0, %s40
      %s41 = sphi 0, %s38
      %s42 = sphi 0, %s41
      %s58 = sphi 0, %s42
      %s64 = sphi 0, %s66
      %s67 = sphi 0, %s64
      %s68 = sphi 0, %s67
      %s84 = sphi 0, %s68
      %s90 = sphi 0, %s92
      %s93 = sphi 0, %s90
      %s94 = sphi 0, %s93
      %s110 = sphi 0, %s94
      %s116 = sphi 0, %s118
      %s119 = sphi 0, %s116
      %s120 = sphi 0, %s119
      %s136 = sphi 0, %s120
      %s142 = sphi 0, %s144
      %s145 = sphi 0, %s142
      %s146 = sphi 0, %s145
      %s162 = sphi 0, %s146
      %s170 = sphi 0, %s172
      %s173 = sphi 0, %s170
      %s174 = sphi 0, %s173
      %s190 = sphi 0, %s174
    $region4: #{tpu_custom_call.1} parent=1 // loop_header_branch
      %19 = sbr.rel (%p17) target = $region8
    $region5: #{tpu_custom_call.1} parent=1 // loop_body
      %s21 = ssub.s32 %s16, 1
      %s22 = ssub.s32 %s16, 2
      %s29 = sadd.s32 1, %s24
      %p30 = scmp.ge.s32.totalorder %s29, 1
      %s31 = scalar_select %p30, 0, %s29
      %s32 = sadd.s32 1, %s23
      %s33 = scalar_select %p30, %s32, %s23
      %p34 = scmp.ge.s32.totalorder %s33, 2
      %s35 = scalar_select %p34, 0, %s33
      %s36 = ssub.s32 %s24, %s31
      %p37 = scmp.eq.s32.totalorder %s36, 0
      %s39 = sadd.s32 %s38, 1
      %s40 = scalar_select %p37, %s38, %s39
      %p43 = pneg %p37
      %p44 = scmp.eq.s32.totalorder %s16, 1
      %p45 = por %p43, %p44
      %p46 = scmp.ne.s32.totalorder %s38, %s41
      %p47 = scmp.eq.s32.totalorder %s16, 0
      %p48 = por %p46, %p47
      %p49 = scmp.ne.s32.totalorder %s38, %s41
      %p50 = scmp.eq.s32.totalorder %s21, 1
      %p51 = por %p49, %p50
      %p52 = scmp.ne.s32.totalorder %s41, %s42
      %p53 = scmp.eq.s32.totalorder %s21, 0
      %p54 = por %p52, %p53
      %p55 = scmp.ne.s32.totalorder %s41, %s42
      %p56 = scmp.eq.s32.totalorder %s22, 1
      %p57 = por %p55, %p56
      %p59 = scmp.ne.s32.totalorder %s42, %s58
      %p60 = scmp.eq.s32.totalorder %s22, 0
      %p61 = por %p59, %p60
      %s62 = ssub.s32 %s24, %s31
      %p63 = scmp.eq.s32.totalorder %s62, 0
      %s65 = sadd.s32 %s64, 1
      %s66 = scalar_select %p63, %s64, %s65
      %p69 = pneg %p63
      %p70 = scmp.eq.s32.totalorder %s16, 1
      %p71 = por %p69, %p70
      %p72 = scmp.ne.s32.totalorder %s64, %s67
      %p73 = scmp.eq.s32.totalorder %s16, 0
      %p74 = por %p72, %p73
      %p75 = scmp.ne.s32.totalorder %s64, %s67
      %p76 = scmp.eq.s32.totalorder %s21, 1
      %p77 = por %p75, %p76
      %p78 = scmp.ne.s32.totalorder %s67, %s68
      %p79 = scmp.eq.s32.totalorder %s21, 0
      %p80 = por %p78, %p79
      %p81 = scmp.ne.s32.totalorder %s67, %s68
      %p82 = scmp.eq.s32.totalorder %s22, 1
      %p83 = por %p81, %p82
      %p85 = scmp.ne.s32.totalorder %s68, %s84
      %p86 = scmp.eq.s32.totalorder %s22, 0
      %p87 = por %p85, %p86
      %s88 = ssub.s32 %s23, %s35
      %p89 = scmp.eq.s32.totalorder %s88, 0
      %s91 = sadd.s32 %s90, 1
      %s92 = scalar_select %p89, %s90, %s91
      %p95 = pneg %p89
      %p96 = scmp.eq.s32.totalorder %s16, 1
      %p97 = por %p95, %p96
      %p98 = scmp.ne.s32.totalorder %s90, %s93
      %p99 = scmp.eq.s32.totalorder %s16, 0
      %p100 = por %p98, %p99
      %p101 = scmp.ne.s32.totalorder %s90, %s93
      %p102 = scmp.eq.s32.totalorder %s21, 1
      %p103 = por %p101, %p102
      %p104 = scmp.ne.s32.totalorder %s93, %s94
      %p105 = scmp.eq.s32.totalorder %s21, 0
      %p106 = por %p104, %p105
      %p107 = scmp.ne.s32.totalorder %s93, %s94
      %p108 = scmp.eq.s32.totalorder %s22, 1
      %p109 = por %p107, %p108
      %p111 = scmp.ne.s32.totalorder %s94, %s110
      %p112 = scmp.eq.s32.totalorder %s22, 0
      %p113 = por %p111, %p112
      %s114 = ssub.s32 %s23, %s35
      %p115 = scmp.eq.s32.totalorder %s114, 0
      %s117 = sadd.s32 %s116, 1
      %s118 = scalar_select %p115, %s116, %s117
      %p121 = pneg %p115
      %p122 = scmp.eq.s32.totalorder %s16, 1
      %p123 = por %p121, %p122
      %p124 = scmp.ne.s32.totalorder %s116, %s119
      %p125 = scmp.eq.s32.totalorder %s16, 0
      %p126 = por %p124, %p125
      %p127 = scmp.ne.s32.totalorder %s116, %s119
      %p128 = scmp.eq.s32.totalorder %s21, 1
      %p129 = por %p127, %p128
      %p130 = scmp.ne.s32.totalorder %s119, %s120
      %p131 = scmp.eq.s32.totalorder %s21, 0
      %p132 = por %p130, %p131
      %p133 = scmp.ne.s32.totalorder %s119, %s120
      %p134 = scmp.eq.s32.totalorder %s22, 1
      %p135 = por %p133, %p134
      %p137 = scmp.ne.s32.totalorder %s120, %s136
      %p138 = scmp.eq.s32.totalorder %s22, 0
      %p139 = por %p137, %p138
      %s140 = ssub.s32 %s23, %s35
      %p141 = scmp.eq.s32.totalorder %s140, 0
      %s143 = sadd.s32 %s142, 1
      %s144 = scalar_select %p141, %s142, %s143
      %p147 = pneg %p141
      %p148 = scmp.eq.s32.totalorder %s16, 1
      %p149 = por %p147, %p148
      %p150 = scmp.ne.s32.totalorder %s142, %s145
      %p151 = scmp.eq.s32.totalorder %s16, 0
      %p152 = por %p150, %p151
      %p153 = scmp.ne.s32.totalorder %s142, %s145
      %p154 = scmp.eq.s32.totalorder %s21, 1
      %p155 = por %p153, %p154
      %p156 = scmp.ne.s32.totalorder %s145, %s146
      %p157 = scmp.eq.s32.totalorder %s21, 0
      %p158 = por %p156, %p157
      %p159 = scmp.ne.s32.totalorder %s145, %s146
      %p160 = scmp.eq.s32.totalorder %s22, 1
      %p161 = por %p159, %p160
      %p163 = scmp.ne.s32.totalorder %s146, %s162
      %p164 = scmp.eq.s32.totalorder %s22, 0
      %p165 = por %p163, %p164
      %s166 = ssub.s32 %s24, %s31
      %s167 = ssub.s32 %s23, %s35
      %s168 = sor.u32 %s166, %s167
      %p169 = scmp.eq.s32.totalorder %s168, 0
      %s171 = sadd.s32 %s170, 1
      %s172 = scalar_select %p169, %s170, %s171
      %p175 = pneg %p169
      %p176 = scmp.eq.s32.totalorder %s16, 1
      %p177 = por %p175, %p176
      %p178 = scmp.ne.s32.totalorder %s170, %s173
      %p179 = scmp.eq.s32.totalorder %s16, 0
      %p180 = por %p178, %p179
      %p181 = scmp.ne.s32.totalorder %s170, %s173
      %p182 = scmp.eq.s32.totalorder %s21, 1
      %p183 = por %p181, %p182
      %p184 = scmp.ne.s32.totalorder %s173, %s174
      %p185 = scmp.eq.s32.totalorder %s21, 0
      %p186 = por %p184, %p185
      %p187 = scmp.ne.s32.totalorder %s173, %s174
      %p188 = scmp.eq.s32.totalorder %s22, 1
      %p189 = por %p187, %p188
      %p191 = scmp.ne.s32.totalorder %s174, %s190
      %p192 = scmp.eq.s32.totalorder %s22, 0
      %p193 = por %p191, %p192
      %p194 = scmp.le.s32.totalorder 1, %s16
      %p195 = scmp.lt.s32.totalorder %s16, 3
      %p196 = pnand %p194, %p195
      %p197 = pneg %p196
      // Predicated region
      $region9: #{tpu_custom_call.1} parent=5 // pred_check
        _
      $region10: #{tpu_custom_call.1} parent=5 // pred_check_branch
        %199 = sbr.rel (%p196) target = $region12
      $region11: #{tpu_custom_call.1} parent=5 // pred_region
        %s200 = ssub.s32 %s16, 1
        // Predicated region
        $region13: #{tpu_custom_call.1} parent=11 // pred_check
          %p201 = pneg %p54
        $region14: #{tpu_custom_call.1} parent=11 // pred_check_branch
          %203 = sbr.rel (%p201) target = $region16
        $region15: #{tpu_custom_call.1} parent=11 // pred_region
          %s204 = smul.u32 3, %s26
          %s206 = ssub.s32 192, 192
          %207 = vsyncadd [#allocation3], %s206
          %s208 = smul.addr %s204, 64
          %s209 = scalar_lea.hbm %s0, %s208
          %s210 = sshll.u32 [#allocation2], 4
          %s211 = int_to_ptr.vmem [resolvable:$true] %s210
          %216 = dma.hbm_to_vmem [thread:$0]  %s209, 192, %s211, [#allocation3], 64, 64, 4
        $region16: #{tpu_custom_call.1} parent=11 // pred_fallthru
          _
        // Predicated region
        $region17: #{tpu_custom_call.1} parent=11 // pred_check
          %p217 = pneg %p80
        $region18: #{tpu_custom_call.1} parent=11 // pred_check_branch
          %219 = sbr.rel (%p217) target = $region20
        $region19: #{tpu_custom_call.1} parent=11 // pred_region
          %s220 = smul.u32 3, %s26
          %s222 = ssub.s32 384, 384
          %223 = vsyncadd [#allocation6], %s222
          %s224 = smul.addr %s220, 2
          %s225 = smul.addr %s224, 64
          %s226 = scalar_lea.hbm %s1, %s225
          %s227 = sshll.u32 [#allocation5], 4
          %s228 = int_to_ptr.vmem [resolvable:$true] %s227
          %233 = dma.hbm_to_vmem [thread:$0]  %s226, 384, %s228, [#allocation6], 128, 128, 8
        $region20: #{tpu_custom_call.1} parent=11 // pred_fallthru
          _
      $region12: #{tpu_custom_call.1} parent=5 // pred_fallthru
        _
      %p234 = scmp.lt.s32.totalorder %s16, 2
      // Predicated region
      $region21: #{tpu_custom_call.1} parent=5 // pred_check
        %p235 = pneg %p234
      $region22: #{tpu_custom_call.1} parent=5 // pred_check_branch
        %237 = sbr.rel (%p235) target = $region24
      $region23: #{tpu_custom_call.1} parent=5 // pred_region
        // Predicated region
        $region25: #{tpu_custom_call.1} parent=23 // pred_check
          %p238 = pneg %p100
        $region26: #{tpu_custom_call.1} parent=23 // pred_check_branch
          %240 = sbr.rel (%p238) target = $region28
        $region27: #{tpu_custom_call.1} parent=23 // pred_region
          %s241 = sand.u32 %s16, 1
          %s242 = scalar_lea.sflag [#allocation3], %s241
          %s243 = sand.u32 %s90, 1
          %s244 = smul.addr %s243, 64
          %s245 = scalar_lea.vmem [#allocation7], %s244
          %s247 = ssub.s32 1024, 1024
          %248 = vsyncadd %s242, %s247
          %s249 = smul.addr %s23, 64
          %s250 = scalar_lea.hbm %s2, %s249
          %s251 = sshll.u32 %s245, 4
          %s252 = int_to_ptr.vmem [resolvable:$true] %s251
          %257 = dma.hbm_to_vmem [thread:$0]  %s250, 1024, %s252, %s242, 128, 64, 4
        $region28: #{tpu_custom_call.1} parent=23 // pred_fallthru
          _
        // Predicated region
        $region29: #{tpu_custom_call.1} parent=23 // pred_check
          %p258 = pneg %p126
        $region30: #{tpu_custom_call.1} parent=23 // pred_check_branch
          %260 = sbr.rel (%p258) target = $region32
        $region31: #{tpu_custom_call.1} parent=23 // pred_region
          %s261 = sand.u32 %s16, 1
          %s262 = scalar_lea.sflag [#allocation3], %s261
          %s263 = sand.u32 %s116, 1
          %s264 = smul.addr %s263, 128
          %s265 = scalar_lea.vmem [#allocation8], %s264
          %s267 = ssub.s32 2048, 2048
          %268 = vsyncadd %s262, %s267
          %s269 = smul.addr %s23, 64
          %s270 = scalar_lea.hbm %s3, %s269
          %s271 = sshll.u32 %s265, 4
          %s272 = int_to_ptr.vmem [resolvable:$true] %s271
          %277 = dma.hbm_to_vmem [thread:$0]  %s270, 2048, %s272, %s262, 128, 64, 4
        $region32: #{tpu_custom_call.1} parent=23 // pred_fallthru
          _
        // Predicated region
        $region33: #{tpu_custom_call.1} parent=23 // pred_check
          %p278 = pneg %p152
        $region34: #{tpu_custom_call.1} parent=23 // pred_check_branch
          %280 = sbr.rel (%p278) target = $region36
        $region35: #{tpu_custom_call.1} parent=23 // pred_region
          %p281 = scmp.lt.s32.totalorder %s23, 1
          %s282 = scalar_select %p281, %s23, 1
          %s283 = scalar_lea.vmem %s4, %s282
        $region36: #{tpu_custom_call.1} parent=23 // pred_fallthru
          _
      $region24: #{tpu_custom_call.1} parent=5 // pred_fallthru
        _
      %p284 = scmp.le.s32.totalorder 1, %s16
      %p285 = scmp.lt.s32.totalorder %s16, 3
      %p286 = pnand %p284, %p285
      %p287 = pneg %p286
      // Predicated region
      $region37: #{tpu_custom_call.1} parent=5 // pred_check
        _
      $region38: #{tpu_custom_call.1} parent=5 // pred_check_branch
        %289 = sbr.rel (%p286) target = $region40
      $region39: #{tpu_custom_call.1} parent=5 // pred_region
        %s290 = ssub.s32 %s16, 1
        // Predicated region
        $region41: #{tpu_custom_call.1} parent=39 // pred_check
          %p291 = pneg %p54
        $region42: #{tpu_custom_call.1} parent=39 // pred_check_branch
          %293 = sbr.rel (%p291) target = $region44
        $region43: #{tpu_custom_call.1} parent=39 // pred_region
          %294 = dma.done [#allocation3], 192
        $region44: #{tpu_custom_call.1} parent=39 // pred_fallthru
          _
        // Predicated region
        $region45: #{tpu_custom_call.1} parent=39 // pred_check
          %p295 = pneg %p80
        $region46: #{tpu_custom_call.1} parent=39 // pred_check_branch
          %297 = sbr.rel (%p295) target = $region48
        $region47: #{tpu_custom_call.1} parent=39 // pred_region
          %298 = dma.done [#allocation6], 384
        $region48: #{tpu_custom_call.1} parent=39 // pred_fallthru
          _
        %s299 = sand.u32 %s21, 1
        %s300 = scalar_lea.sflag [#allocation3], %s299
        %s301 = sand.u32 %s93, 1
        %s302 = smul.addr %s301, 64
        %s303 = scalar_lea.vmem [#allocation7], %s302
        // Predicated region
        $region49: #{tpu_custom_call.1} parent=39 // pred_check
          %p304 = pneg %p106
        $region50: #{tpu_custom_call.1} parent=39 // pred_check_branch
          %306 = sbr.rel (%p304) target = $region52
        $region51: #{tpu_custom_call.1} parent=39 // pred_region
          %307 = dma.done %s300, 1024
        $region52: #{tpu_custom_call.1} parent=39 // pred_fallthru
          _
        %s308 = sand.u32 %s21, 1
        %s309 = scalar_lea.sflag [#allocation3], %s308
        %s310 = sand.u32 %s119, 1
        %s311 = smul.addr %s310, 128
        %s312 = scalar_lea.vmem [#allocation8], %s311
        // Predicated region
        $region53: #{tpu_custom_call.1} parent=39 // pred_check
          %p313 = pneg %p132
        $region54: #{tpu_custom_call.1} parent=39 // pred_check_branch
          %315 = sbr.rel (%p313) target = $region56
        $region55: #{tpu_custom_call.1} parent=39 // pred_region
          %316 = dma.done %s309, 2048
        $region56: #{tpu_custom_call.1} parent=39 // pred_fallthru
          _
        %p317 = pneg %p54
        %p318 = pneg %p51
        %p319 = pneg %p80
        %p320 = pneg %p77
        %s321 = sand.u32 %s21, 1
        %s322 = scalar_lea.sflag [#allocation3], %s321
        %s323 = sand.u32 %s93, 1
        %s324 = smul.addr %s323, 64
        %s325 = scalar_lea.vmem [#allocation7], %s324
        %p326 = pneg %p106
        %p327 = pneg %p103
        %s328 = sand.u32 %s21, 1
        %s329 = scalar_lea.sflag [#allocation3], %s328
        %s330 = sand.u32 %s119, 1
        %s331 = smul.addr %s330, 128
        %s332 = scalar_lea.vmem [#allocation8], %s331
        %p333 = pneg %p132
        %p334 = pneg %p129
        %p335 = scmp.lt.s32.totalorder %s25, 1
        %s336 = scalar_select %p335, %s25, 1
        %s337 = scalar_lea.vmem %s4, %s336
        %p338 = pneg %p158
        %p339 = pneg %p155
        %p340 = pneg %p186
        %p341 = pneg %p183
        %s342 = sand.u32 %s173, 1
        %s343 = scalar_lea.sflag [#allocation4], %s342
        %s344 = sand.u32 %s173, 1
        %s345 = smul.addr %s344, 24
        %s346 = scalar_lea.vmem [#allocation9], %s345
        %s347 = smul.u32 3, %s26
        %s348 = smul.u32 3, %s26
        %p349 = scmp.lt.s32.totalorder %s25, 1
        %s350 = scalar_select %p349, %s25, 1
        %s351 = scalar_lea.vmem %s4, %s350
        %s352 = smul.u32 3, %s26
        %v354 = vld [vmem:[#allocation2] sm:$0xf]
        %v355 = vld [vmem:[#allocation2 + $0x4] sm:$0xf]
        %v356 = vld [vmem:[#allocation2 + $0x8] sm:$0x3]
        %v357 = vld [vmem:[%s303] sm:$0xf]
        %v358 = vld [vmem:[%s303 + $0x4] sm:$0xf]
        %v359 = vld [vmem:[%s303 + $0x8] sm:$0xf]
        %v360 = vld [vmem:[%s303 + $0xc] sm:$0xf]
        %v361 = vld [vmem:[%s303 + $0x10] sm:$0xf]
        %v362 = vld [vmem:[%s303 + $0x14] sm:$0xf]
        %v363 = vld [vmem:[%s303 + $0x18] sm:$0xf]
        %v364 = vld [vmem:[%s303 + $0x1c] sm:$0xf]
        %v365 = vld [vmem:[%s303 + $0x20] sm:$0xf]
        %v366 = vld [vmem:[%s303 + $0x24] sm:$0xf]
        %v367 = vld [vmem:[%s303 + $0x28] sm:$0xf]
        %v368 = vld [vmem:[%s303 + $0x2c] sm:$0xf]
        %v369 = vld [vmem:[%s303 + $0x30] sm:$0xf]
        %v370 = vld [vmem:[%s303 + $0x34] sm:$0xf]
        %v371 = vld [vmem:[%s303 + $0x38] sm:$0xf]
        %v372 = vld [vmem:[%s303 + $0x3c] sm:$0xf]
        %v373 = vld [vmem:[#allocation5] sm:$0xff]
        %v374 = vld [vmem:[#allocation5 + $0x8] sm:$0xff]
        %v375 = vld [vmem:[#allocation5 + $0x10] sm:$0x33]
        %v376 = vld [vmem:[%s312] sm:$0xf]
        %v377 = vld [vmem:[%s312 + $0x4] sm:$0xf]
        %v378 = vld [vmem:[%s312 + $0x8] sm:$0xf]
        %v379 = vld [vmem:[%s312 + $0xc] sm:$0xf]
        %v380 = vld [vmem:[%s312 + $0x10] sm:$0xf]
        %v381 = vld [vmem:[%s312 + $0x14] sm:$0xf]
        %v382 = vld [vmem:[%s312 + $0x18] sm:$0xf]
        %v383 = vld [vmem:[%s312 + $0x1c] sm:$0xf]
        %v384 = vld [vmem:[%s312 + $0x20] sm:$0xf]
        %v385 = vld [vmem:[%s312 + $0x24] sm:$0xf]
        %v386 = vld [vmem:[%s312 + $0x28] sm:$0xf]
        %v387 = vld [vmem:[%s312 + $0x2c] sm:$0xf]
        %v388 = vld [vmem:[%s312 + $0x30] sm:$0xf]
        %v389 = vld [vmem:[%s312 + $0x34] sm:$0xf]
        %v390 = vld [vmem:[%s312 + $0x38] sm:$0xf]
        %v391 = vld [vmem:[%s312 + $0x3c] sm:$0xf]
        %v392 = vld [vmem:[%s312 + $0x40] sm:$0xf]
        %v393 = vld [vmem:[%s312 + $0x44] sm:$0xf]
        %v394 = vld [vmem:[%s312 + $0x48] sm:$0xf]
        %v395 = vld [vmem:[%s312 + $0x4c] sm:$0xf]
        %v396 = vld [vmem:[%s312 + $0x50] sm:$0xf]
        %v397 = vld [vmem:[%s312 + $0x54] sm:$0xf]
        %v398 = vld [vmem:[%s312 + $0x58] sm:$0xf]
        %v399 = vld [vmem:[%s312 + $0x5c] sm:$0xf]
        %v400 = vld [vmem:[%s312 + $0x60] sm:$0xf]
        %v401 = vld [vmem:[%s312 + $0x64] sm:$0xf]
        %v402 = vld [vmem:[%s312 + $0x68] sm:$0xf]
        %v403 = vld [vmem:[%s312 + $0x6c] sm:$0xf]
        %v404 = vld [vmem:[%s312 + $0x70] sm:$0xf]
        %v405 = vld [vmem:[%s312 + $0x74] sm:$0xf]
        %v406 = vld [vmem:[%s312 + $0x78] sm:$0xf]
        %v407 = vld [vmem:[%s312 + $0x7c] sm:$0xf]
        %v411 = vunpack.c.l.b16 %v373
        %v412 = vunpack.c.h.b16 %v373
        %v413 = vunpack.c.l.b16 %v374
        %v414 = vunpack.c.h.b16 %v374
        %v415 = vunpack.c.l.b16 %v375
        %v416 = vunpack.c.h.b16 %v375
        %v417 = vpack.c.b16 %v413, %v411
        %v418 = vpack.c.b16 %v414, %v412
        %v419 = vpack.c.b16 %v415, %v415
        %v420 = vpack.c.b16 %v416, %v416
        %v457 = vunpack.c.l.b16 %v376
        %v458 = vunpack.c.l.b16 %v377
        %v459 = vunpack.c.l.b16 %v378
        %v460 = vunpack.c.l.b16 %v379
        %v461 = vunpack.c.l.b16 %v380
        %v462 = vunpack.c.l.b16 %v381
        %v463 = vunpack.c.l.b16 %v382
        %v464 = vunpack.c.l.b16 %v383
        %v465 = vunpack.c.l.b16 %v384
        %v466 = vunpack.c.l.b16 %v385
        %v467 = vunpack.c.l.b16 %v386
        %v468 = vunpack.c.l.b16 %v387
        %v469 = vunpack.c.l.b16 %v388
        %v470 = vunpack.c.l.b16 %v389
        %v471 = vunpack.c.l.b16 %v390
        %v472 = vunpack.c.l.b16 %v391
        %v473 = vunpack.c.l.b16 %v392
        %v474 = vunpack.c.l.b16 %v393
        %v475 = vunpack.c.l.b16 %v394
        %v476 = vunpack.c.l.b16 %v395
        %v477 = vunpack.c.l.b16 %v396
        %v478 = vunpack.c.l.b16 %v397
        %v479 = vunpack.c.l.b16 %v398
        %v480 = vunpack.c.l.b16 %v399
        %v481 = vunpack.c.l.b16 %v400
        %v482 = vunpack.c.l.b16 %v401
        %v483 = vunpack.c.l.b16 %v402
        %v484 = vunpack.c.l.b16 %v403
        %v485 = vunpack.c.l.b16 %v404
        %v486 = vunpack.c.l.b16 %v405
        %v487 = vunpack.c.l.b16 %v406
        %v488 = vunpack.c.l.b16 %v407
        %v489 = vpack.c.b16 %v458, %v457
        %v490 = vpack.c.b16 %v460, %v459
        %v491 = vpack.c.b16 %v462, %v461
        %v492 = vpack.c.b16 %v464, %v463
        %v493 = vpack.c.b16 %v466, %v465
        %v494 = vpack.c.b16 %v468, %v467
        %v495 = vpack.c.b16 %v470, %v469
        %v496 = vpack.c.b16 %v472, %v471
        %v497 = vpack.c.b16 %v474, %v473
        %v498 = vpack.c.b16 %v476, %v475
        %v499 = vpack.c.b16 %v478, %v477
        %v500 = vpack.c.b16 %v480, %v479
        %v501 = vpack.c.b16 %v482, %v481
        %v502 = vpack.c.b16 %v484, %v483
        %v503 = vpack.c.b16 %v486, %v485
        %v504 = vpack.c.b16 %v488, %v487
        %521 = vmatprep.subr.bf16.mxu0 0
        %522 = vmatpush1.bf16.msra.mxu0 %v489
        %523 = vmatprep.subr.bf16.mxu0 0
        %524 = vmatpush1.bf16.msra.mxu0 %v490
        %525 = vmatprep.subr.bf16.mxu0 0
        %526 = vmatpush1.bf16.msra.mxu0 %v491
        %527 = vmatprep.subr.bf16.mxu0 0
        %528 = vmatpush1.bf16.msra.mxu0 %v492
        %529 = vmatprep.subr.bf16.mxu0 0
        %530 = vmatpush1.bf16.msra.mxu0 %v493
        %531 = vmatprep.subr.bf16.mxu0 0
        %532 = vmatpush1.bf16.msra.mxu0 %v494
        %533 = vmatprep.subr.bf16.mxu0 0
        %534 = vmatpush1.bf16.msra.mxu0 %v495
        %535 = vmatprep.subr.bf16.mxu0 0
        %536 = vmatpush1.bf16.msra.mxu0 %v496
        %537 = vmatprep.subr.bf16.mxu0 0
        %538 = vmatpush1.bf16.msra.mxu0 %v497
        %539 = vmatprep.subr.bf16.mxu0 0
        %540 = vmatpush1.bf16.msra.mxu0 %v498
        %541 = vmatprep.subr.bf16.mxu0 0
        %542 = vmatpush1.bf16.msra.mxu0 %v499
        %543 = vmatprep.subr.bf16.mxu0 0
        %544 = vmatpush1.bf16.msra.mxu0 %v500
        %545 = vmatprep.subr.bf16.mxu0 0
        %546 = vmatpush1.bf16.msra.mxu0 %v501
        %547 = vmatprep.subr.bf16.mxu0 0
        %548 = vmatpush1.bf16.msra.mxu0 %v502
        %549 = vmatprep.subr.bf16.mxu0 0
        %550 = vmatpush1.bf16.msra.mxu0 %v503
        %551 = vmatprep.subr.bf16.mxu0 0
        %552 = vmatpush1.bf16.msra.mxu0 %v504
        %553 = vmatprep.mubr.bf16.mxu0 %v418
        %554 = vmatmul.mubr.bf16.gmra.mrb[0].mxu0 %v417
        %v555 = vpop.f32.mrb[0].mxu0
        %v556 = vadd.f32 0.0, %v555
        %v557 = vpop.f32.mrb[0].mxu0
        %v558 = vpop.f32.mrb[0].mxu0
        %v559 = vadd.f32 0.0, %v558
        %v560 = vpop.f32.mrb[0].mxu0
        %561 = vmatprep.mubr.bf16.mxu0 %v420
        %562 = vmatmul.mubr.bf16.gmra.mrb[0].mxu0 %v419
        %v563 = vpop.f32.mrb[0].mxu0
        %v564 = vadd.f32 0.0, %v563
        %v565 = vpop.f32.mrb[0].mxu0
        %v566 = vpop.f32.mrb[0].mxu0
        %v567 = vpop.f32.mrb[0].mxu0
        %568 = vdwg.mxu0
        %v572 = vunpack.c.l.b16 %v354
        %v573 = vunpack.c.l.b16 %v355
        %v574 = vunpack.c.l.b16 %v356
        %v575 = vpack.c.b16 %v573, %v572
        %v576 = vpack.c.b16 %v574, %v574
        %v595 = vunpack.c.l.b16 %v357
        %v596 = vunpack.c.l.b16 %v358
        %v597 = vunpack.c.l.b16 %v359
        %v598 = vunpack.c.l.b16 %v360
        %v599 = vunpack.c.l.b16 %v361
        %v600 = vunpack.c.l.b16 %v362
        %v601 = vunpack.c.l.b16 %v363
        %v602 = vunpack.c.l.b16 %v364
        %v603 = vunpack.c.l.b16 %v365
        %v604 = vunpack.c.l.b16 %v366
        %v605 = vunpack.c.l.b16 %v367
        %v606 = vunpack.c.l.b16 %v368
        %v607 = vunpack.c.l.b16 %v369
        %v608 = vunpack.c.l.b16 %v370
        %v609 = vunpack.c.l.b16 %v371
        %v610 = vunpack.c.l.b16 %v372
        %v611 = vpack.c.b16 %v596, %v595
        %v612 = vpack.c.b16 %v598, %v597
        %v613 = vpack.c.b16 %v600, %v599
        %v614 = vpack.c.b16 %v602, %v601
        %v615 = vpack.c.b16 %v604, %v603
        %v616 = vpack.c.b16 %v606, %v605
        %v617 = vpack.c.b16 %v608, %v607
        %v618 = vpack.c.b16 %v610, %v609
        %627 = vmatprep.subr.bf16.mxu0 0
        %628 = vmatpush1.bf16.msra.mxu0 %v611
        %629 = vmatprep.subr.bf16.mxu0 0
        %630 = vmatpush1.bf16.msra.mxu0 %v612
        %631 = vmatprep.subr.bf16.mxu0 0
        %632 = vmatpush1.bf16.msra.mxu0 %v613
        %633 = vmatprep.subr.bf16.mxu0 0
        %634 = vmatpush1.bf16.msra.mxu0 %v614
        %635 = vmatprep.subr.bf16.mxu0 0
        %636 = vmatpush1.bf16.msra.mxu0 %v615
        %637 = vmatprep.subr.bf16.mxu0 0
        %638 = vmatpush1.bf16.msra.mxu0 %v616
        %639 = vmatprep.subr.bf16.mxu0 0
        %640 = vmatpush1.bf16.msra.mxu0 %v617
        %641 = vmatprep.subr.bf16.mxu0 0
        %642 = vmatpush1.bf16.msra.mxu0 %v618
        %643 = vmatprep.subr.bf16.mxu0 0
        %644 = vmatpush1.bf16.msra.mxu0 0
        %645 = vmatprep.subr.bf16.mxu0 0
        %646 = vmatpush1.bf16.msra.mxu0 0
        %647 = vmatprep.subr.bf16.mxu0 0
        %648 = vmatpush1.bf16.msra.mxu0 0
        %649 = vmatprep.subr.bf16.mxu0 0
        %650 = vmatpush1.bf16.msra.mxu0 0
        %651 = vmatprep.subr.bf16.mxu0 0
        %652 = vmatpush1.bf16.msra.mxu0 0
        %653 = vmatprep.subr.bf16.mxu0 0
        %654 = vmatpush1.bf16.msra.mxu0 0
        %655 = vmatprep.subr.bf16.mxu0 0
        %656 = vmatpush1.bf16.msra.mxu0 0
        %657 = vmatprep.subr.bf16.mxu0 0
        %658 = vmatpush1.bf16.msra.mxu0 0
        %659 = vmatprep.mubr.bf16.mxu0 0
        %660 = vmatmul.mubr.bf16.gmra.mrb[0].mxu0 %v575
        %v661 = vpop.f32.mrb[0].mxu0
        %v662 = vadd.f32 %v556, %v661
        %v663 = vpop.f32.mrb[0].mxu0
        %v664 = vpop.f32.mrb[0].mxu0
        %v665 = vadd.f32 %v559, %v664
        %v666 = vpop.f32.mrb[0].mxu0
        %667 = vmatprep.mubr.bf16.mxu0 0
        %668 = vmatmul.mubr.bf16.gmra.mrb[0].mxu0 %v576
        %v669 = vpop.f32.mrb[0].mxu0
        %v670 = vadd.f32 %v564, %v669
        %v671 = vpop.f32.mrb[0].mxu0
        %v672 = vpop.f32.mrb[0].mxu0
        %v673 = vpop.f32.mrb[0].mxu0
        %674 = vdwg.mxu0
        %v675 = vld [vmem:[%s351] sm:$0x1]
        %v677 = vlaneseq
        %v678 = vshrl.u32 %v677, 7
        %v679 = vsub.s32 0, %v678
        %v680 = vrot.slane %v675, %v679
        %v682 = vadd.f32 %v662, %v680
        %v683 = vadd.f32 %v665, %v680
        %v684 = vadd.f32 %v670, %v680
        %685 = vst [vmem:[%s346] sm:$0xff] %v682
        %686 = vst [vmem:[%s346 + $0x8] sm:$0xff] %v683
        %687 = vst [vmem:[%s346 + $0x10] sm:$0xf] %v684
        %s688 = sand.u32 %s173, 1
        %s689 = scalar_lea.sflag [#allocation4], %s688
        %s690 = sand.u32 %s173, 1
        %s691 = smul.addr %s690, 24
        %s692 = scalar_lea.vmem [#allocation9], %s691
        // Predicated region
        $region57: #{tpu_custom_call.1} parent=39 // pred_check
          %p693 = pneg %p183
        $region58: #{tpu_custom_call.1} parent=39 // pred_check_branch
          %695 = sbr.rel (%p693) target = $region60
        $region59: #{tpu_custom_call.1} parent=39 // pred_region
          %s696 = smul.u32 3, %s26
          %s698 = ssub.s32 384, 384
          %699 = vsyncadd %s689, %s698
          %s700 = smul.addr %s696, 2
          %s701 = sadd.s32 %s25, %s700
          %s702 = smul.addr %s701, 128
          %s703 = scalar_lea.hbm %s5, %s702
          %s704 = sshll.u32 %s692, 4
          %s705 = int_to_ptr.vmem [resolvable:$true] %s704
          %710 = dma.vmem_to_hbm [thread:$0]  %s705, 384, %s703, %s689, 128, 256, 8
        $region60: #{tpu_custom_call.1} parent=39 // pred_fallthru
          _
      $region40: #{tpu_custom_call.1} parent=5 // pred_fallthru
        _
      %p711 = scmp.le.s32.totalorder 2, %s16
      // Predicated region
      $region61: #{tpu_custom_call.1} parent=5 // pred_check
        %p712 = pneg %p711
      $region62: #{tpu_custom_call.1} parent=5 // pred_check_branch
        %714 = sbr.rel (%p712) target = $region64
      $region63: #{tpu_custom_call.1} parent=5 // pred_region
        %s715 = ssub.s32 %s16, 2
        // Predicated region
        $region65: #{tpu_custom_call.1} parent=63 // pred_check
          %p716 = pneg %p189
        $region66: #{tpu_custom_call.1} parent=63 // pred_check_branch
          %718 = sbr.rel (%p716) target = $region68
        $region67: #{tpu_custom_call.1} parent=63 // pred_region
          %s719 = sand.u32 %s174, 1
          %s720 = scalar_lea.sflag [#allocation4], %s719
          %s721 = sand.u32 %s174, 1
          %s722 = smul.addr %s721, 24
          %s723 = scalar_lea.vmem [#allocation9], %s722
          %724 = dma.done %s720, 384
        $region68: #{tpu_custom_call.1} parent=63 // pred_fallthru
          _
      $region64: #{tpu_custom_call.1} parent=5 // pred_fallthru
        _
    $region6: #{tpu_custom_call.1} parent=1 // loop_footer
      %s20 = sadd.s32 1, %s16
    $region7: #{tpu_custom_call.1} parent=1 // loop_footer_branch
      %15 = sbr.rel target = $region3
    $region8: #{tpu_custom_call.1} parent=1 // loop_exit
      _
    %725 = vsyncpa [#allocation3], 1
    %s726 = scalar_lea.sflag [#allocation3], 1
    %727 = vsyncpa %s726, 1
    %728 = vsyncpa [#allocation6], 1
    %729 = vsyncpa [#allocation4], 1
    %s730 = scalar_lea.sflag [#allocation4], 1
    %731 = vsyncpa %s730, 1

</llo_original>
